<compile_context>
chip_gen: v5e
topology: v5e:2x2
jax: 0.10.0
libtpu: 0.0.40
codegen_flags: <defaults>
</compile_context>

<pallas_src>
import functools

import jax
import jax.numpy as jnp
from jax.experimental import pallas as pl
from jax.experimental.pallas import tpu as pltpu


def _round_up(x, m):
    return (x + m - 1) // m * m


def mlp_kernel(x_ref, w1_ref, w2_ref, w3_ref, w4_ref, b_ref, o_ref,
               *, dims, compute_dtype):
    """One batch tile: 4 matmuls on the MXU, bias+ReLU in f32 on the VPU."""
    _, d1, d2, d3, d4 = dims  # padded fan-outs of layers 1..4

    # Layer 1 + ReLU
    h = jnp.dot(x_ref[...], w1_ref[...], preferred_element_type=jnp.float32)
    h = jnp.maximum(h + b_ref[0:1, :d1], 0.0)
    # Layer 2 + ReLU
    h = jnp.dot(h.astype(compute_dtype), w2_ref[...],
                preferred_element_type=jnp.float32)
    h = jnp.maximum(h + b_ref[1:2, :d2], 0.0)
    # Layer 3 + ReLU
    h = jnp.dot(h.astype(compute_dtype), w3_ref[...],
                preferred_element_type=jnp.float32)
    h = jnp.maximum(h + b_ref[2:3, :d3], 0.0)
    # Layer 4 (no activation; nn.Sigmoid is defined but unused in forward)
    h = jnp.dot(h.astype(compute_dtype), w4_ref[...],
                preferred_element_type=jnp.float32)
    h = h + b_ref[3:4, :d4]
    o_ref[...] = h.astype(o_ref.dtype)


def mlp_forward(x, params, *, compute_dtype=jnp.bfloat16, tm=None):
    """x: [B, n_input] float32; params: w{1..4} as [in, out], b{1..4} as [out]."""
    B, n_in = x.shape
    dims = [n_in, params["w1"].shape[1], params["w2"].shape[1],
            params["w3"].shape[1], params["w4"].shape[1]]
    n_out = dims[4]

    # Pad every feature dim to the 128-lane width.
    pdims = [_round_up(d, 128) for d in dims]
    d0p, d1p, d2p, d3p, d4p = pdims
    bmax = max(pdims[1:])

    # Batch tile: 256 rows matches the v6e/v7x MXU height (also fine on v5e);
    # tiny batches are padded to a single full-extent block (multiple of 8).
    if tm is None:
        tm = 256 if B >= 256 else _round_up(max(B, 1), 8)
    b_pad = _round_up(B, tm)

    # Zero-pad and cast the dot operands (bf16 halves HBM traffic + VMEM).
    xp = jnp.zeros((b_pad, d0p), jnp.float32).at[:B, :n_in].set(x)
    xp = xp.astype(compute_dtype)

    def pad_w(w, di, do):
        wp = jnp.zeros((di, do), jnp.float32).at[:w.shape[0], :w.shape[1]].set(w)
        return wp.astype(compute_dtype)

    w1p = pad_w(params["w1"], d0p, d1p)
    w2p = pad_w(params["w2"], d1p, d2p)
    w3p = pad_w(params["w3"], d2p, d3p)
    w4p = pad_w(params["w4"], d3p, d4p)

    # Stack the four biases into one lane-dense f32 array (single DMA).
    ball = jnp.zeros((4, bmax), jnp.float32)
    ball = ball.at[0, :dims[1]].set(params["b1"])
    ball = ball.at[1, :dims[2]].set(params["b2"])
    ball = ball.at[2, :dims[3]].set(params["b3"])
    ball = ball.at[3, :dims[4]].set(params["b4"])

    grid = (b_pad // tm,)
    const = lambda i: (0, 0)  # weights/biases resident across batch grid steps

    kernel = functools.partial(mlp_kernel, dims=tuple(pdims),
                               compute_dtype=compute_dtype)

    out_p = pl.pallas_call(
        kernel,
        out_shape=jax.ShapeDtypeStruct((b_pad, d4p), jnp.float32),
        grid=grid,
        in_specs=[
            pl.BlockSpec((tm, d0p), lambda i: (i, 0)),   # x tile per grid step
            pl.BlockSpec((d0p, d1p), const),
            pl.BlockSpec((d1p, d2p), const),
            pl.BlockSpec((d2p, d3p), const),
            pl.BlockSpec((d3p, d4p), const),
            pl.BlockSpec((4, bmax), const),              # stacked biases
        ],
        out_specs=pl.BlockSpec((tm, d4p), lambda i: (i, 0)),
        compiler_params=pltpu.CompilerParams(
            dimension_semantics=("parallel",)),          # shards across TCs on v7x
    )(xp, w1p, w2p, w3p, w4p, ball)

    # Strip the batch/feature padding.
    return out_p[:B, :n_out]


def init_params(key, n_input, n_output):
    """Deterministic init mirroring nn.Linear's U(-1/sqrt(fan_in), 1/sqrt(fan_in))."""
    dims = [n_input, n_input * 2, n_input * 4, n_input * 2, n_output]
    params = {}
    keys = jax.random.split(key, 8)
    for i in range(4):
        fan_in, fan_out = dims[i], dims[i + 1]
        bound = 1.0 / (fan_in ** 0.5)
        w = jax.random.uniform(keys[2 * i], (fan_in, fan_out),
                               minval=-bound, maxval=bound, dtype=jnp.float32)
        b = jax.random.uniform(keys[2 * i + 1], (fan_out,),
                               minval=-bound, maxval=bound, dtype=jnp.float32)
        params[f"w{i + 1}"] = w
        params[f"b{i + 1}"] = b
    return params


def reference_forward(x, params):
    h = jnp.maximum(x @ params["w1"] + params["b1"], 0.0)
    h = jnp.maximum(h @ params["w2"] + params["b2"], 0.0)
    h = jnp.maximum(h @ params["w3"] + params["b3"], 0.0)
    return h @ params["w4"] + params["b4"]


if __name__ == "__main__":
    n_input, hidden_size, n_output = 16, 32, 8  # hidden_size unused by the module
    batch = 2

    key = jax.random.PRNGKey(0)
    k_params, k_x = jax.random.split(key)
    params = init_params(k_params, n_input, n_output)
    x = jax.random.normal(k_x, (batch, n_input), dtype=jnp.float32)

    ref = reference_forward(x, params)

    # f32 MXU path: exact parity with the PyTorch float32 forward.
    out_f32 = jax.block_until_ready(
        mlp_forward(x, params, compute_dtype=jnp.float32))
    assert out_f32.shape == (batch, n_output)
    assert jnp.allclose(out_f32, ref, atol=1e-5, rtol=1e-5)

    # bf16 MXU path (default, native MXU dtype): looser tolerance per bf16 rounding.
    out_bf16 = jax.block_until_ready(mlp_forward(x, params))
    assert out_bf16.shape == (batch, n_output)
    assert jnp.allclose(out_bf16, ref, atol=5e-2, rtol=5e-2)

    print("KERNEL_OK")
</pallas_src>

<mosaic_0001>
module attributes {stable_mosaic.version = 11 : i64} {
  func.func @mlp_kernel(%arg0: i32, %arg1: memref<8x128xf32, #tpu.memory_space<vmem>>, %arg2: memref<128x128xf32, #tpu.memory_space<vmem>>, %arg3: memref<128x128xf32, #tpu.memory_space<vmem>>, %arg4: memref<128x128xf32, #tpu.memory_space<vmem>>, %arg5: memref<128x128xf32, #tpu.memory_space<vmem>>, %arg6: memref<4x128xf32, #tpu.memory_space<vmem>>, %arg7: memref<8x128xf32, #tpu.memory_space<vmem>>) attributes {dimension_semantics = [#tpu.dimension_semantics<parallel>], iteration_bounds = array<i64: 1>, scalar_prefetch = 0 : i64, scratch_operands = 0 : i64, tpu.core_type = #tpu.core_type<tc>, window_params = [{transform_indices = @transform_0, window_bounds = array<i64: 8, 128>}, {pipeline_mode = #tpu.pipeline_mode<synchronous>, transform_indices = @transform_1, window_bounds = array<i64: 128, 128>}, {pipeline_mode = #tpu.pipeline_mode<synchronous>, transform_indices = @transform_2, window_bounds = array<i64: 128, 128>}, {pipeline_mode = #tpu.pipeline_mode<synchronous>, transform_indices = @transform_3, window_bounds = array<i64: 128, 128>}, {pipeline_mode = #tpu.pipeline_mode<synchronous>, transform_indices = @transform_4, window_bounds = array<i64: 128, 128>}, {pipeline_mode = #tpu.pipeline_mode<synchronous>, transform_indices = @transform_5, window_bounds = array<i64: 4, 128>}, {transform_indices = @transform_6, window_bounds = array<i64: 8, 128>}]} {
    %c0 = arith.constant 0 : index
    %c0_0 = arith.constant 0 : index
    %0 = vector.load %arg1[%c0, %c0_0] : memref<8x128xf32, #tpu.memory_space<vmem>>, vector<8x128xf32>
    %c0_1 = arith.constant 0 : index
    %c0_2 = arith.constant 0 : index
    %1 = vector.load %arg2[%c0_1, %c0_2] : memref<128x128xf32, #tpu.memory_space<vmem>>, vector<128x128xf32>
    %cst = arith.constant dense<0.000000e+00> : vector<8x128xf32>
    %2 = tpu.matmul %0, %1, %cst {dimension_numbers = #tpu.dot_dimension_numbers<[1], [0], [0], [1], [0, 0, 1, 1], [], []>} : vector<8x128xf32>, vector<128x128xf32>, vector<8x128xf32> -> vector<8x128xf32>
    %c0_3 = arith.constant 0 : index
    %c0_4 = arith.constant 0 : index
    %3 = vector.load %arg6[%c0_3, %c0_4] : memref<4x128xf32, #tpu.memory_space<vmem>>, vector<1x128xf32>
    %4 = vector.broadcast %3 : vector<1x128xf32> to vector<8x128xf32>
    %5 = arith.addf %2, %4 : vector<8x128xf32>
    %cst_5 = arith.constant 0.000000e+00 : f32
    %6 = vector.broadcast %cst_5 : f32 to vector<8x128xf32>
    %7 = arith.maximumf %5, %6 : vector<8x128xf32>
    %c0_6 = arith.constant 0 : index
    %c0_7 = arith.constant 0 : index
    %8 = vector.load %arg3[%c0_6, %c0_7] : memref<128x128xf32, #tpu.memory_space<vmem>>, vector<128x128xf32>
    %cst_8 = arith.constant dense<0.000000e+00> : vector<8x128xf32>
    %9 = tpu.matmul %7, %8, %cst_8 {dimension_numbers = #tpu.dot_dimension_numbers<[1], [0], [0], [1], [0, 0, 1, 1], [], []>} : vector<8x128xf32>, vector<128x128xf32>, vector<8x128xf32> -> vector<8x128xf32>
    %c1 = arith.constant 1 : index
    %c0_9 = arith.constant 0 : index
    %10 = vector.load %arg6[%c1, %c0_9] : memref<4x128xf32, #tpu.memory_space<vmem>>, vector<1x128xf32>
    %11 = vector.broadcast %10 : vector<1x128xf32> to vector<8x128xf32>
    %12 = arith.addf %9, %11 : vector<8x128xf32>
    %cst_10 = arith.constant 0.000000e+00 : f32
    %13 = vector.broadcast %cst_10 : f32 to vector<8x128xf32>
    %14 = arith.maximumf %12, %13 : vector<8x128xf32>
    %c0_11 = arith.constant 0 : index
    %c0_12 = arith.constant 0 : index
    %15 = vector.load %arg4[%c0_11, %c0_12] : memref<128x128xf32, #tpu.memory_space<vmem>>, vector<128x128xf32>
    %cst_13 = arith.constant dense<0.000000e+00> : vector<8x128xf32>
    %16 = tpu.matmul %14, %15, %cst_13 {dimension_numbers = #tpu.dot_dimension_numbers<[1], [0], [0], [1], [0, 0, 1, 1], [], []>} : vector<8x128xf32>, vector<128x128xf32>, vector<8x128xf32> -> vector<8x128xf32>
    %c2 = arith.constant 2 : index
    %c0_14 = arith.constant 0 : index
    %17 = vector.load %arg6[%c2, %c0_14] : memref<4x128xf32, #tpu.memory_space<vmem>>, vector<1x128xf32>
    %18 = vector.broadcast %17 : vector<1x128xf32> to vector<8x128xf32>
    %19 = arith.addf %16, %18 : vector<8x128xf32>
    %cst_15 = arith.constant 0.000000e+00 : f32
    %20 = vector.broadcast %cst_15 : f32 to vector<8x128xf32>
    %21 = arith.maximumf %19, %20 : vector<8x128xf32>
    %c0_16 = arith.constant 0 : index
    %c0_17 = arith.constant 0 : index
    %22 = vector.load %arg5[%c0_16, %c0_17] : memref<128x128xf32, #tpu.memory_space<vmem>>, vector<128x128xf32>
    %cst_18 = arith.constant dense<0.000000e+00> : vector<8x128xf32>
    %23 = tpu.matmul %21, %22, %cst_18 {dimension_numbers = #tpu.dot_dimension_numbers<[1], [0], [0], [1], [0, 0, 1, 1], [], []>} : vector<8x128xf32>, vector<128x128xf32>, vector<8x128xf32> -> vector<8x128xf32>
    %c3 = arith.constant 3 : index
    %c0_19 = arith.constant 0 : index
    %24 = vector.load %arg6[%c3, %c0_19] : memref<4x128xf32, #tpu.memory_space<vmem>>, vector<1x128xf32>
    %25 = vector.broadcast %24 : vector<1x128xf32> to vector<8x128xf32>
    %26 = arith.addf %23, %25 : vector<8x128xf32>
    %c0_20 = arith.constant 0 : index
    %c0_21 = arith.constant 0 : index
    %27 = vector.load %arg7[%c0_20, %c0_21] : memref<8x128xf32, #tpu.memory_space<vmem>>, vector<8x128xf32>
    tpu.vector_store %arg7[%c0_20, %c0_21], %26 {strides = array<i32>} : memref<8x128xf32, #tpu.memory_space<vmem>>, vector<8x128xf32>,
    return
  }
  func.func @transform_0(%arg0: i32) -> (i32, i32) {
    %c0_i32 = arith.constant 0 : i32
    %c0_i32_0 = arith.constant 0 : i32
    return %arg0, %c0_i32 : i32, i32
  }
  func.func @transform_1(%arg0: i32) -> (i32, i32) {
    %c0_i32 = arith.constant 0 : i32
    %c0_i32_0 = arith.constant 0 : i32
    %c0_i32_1 = arith.constant 0 : i32
    return %c0_i32, %c0_i32_0 : i32, i32
  }
  func.func @transform_2(%arg0: i32) -> (i32, i32) {
    %c0_i32 = arith.constant 0 : i32
    %c0_i32_0 = arith.constant 0 : i32
    %c0_i32_1 = arith.constant 0 : i32
    return %c0_i32, %c0_i32_0 : i32, i32
  }
  func.func @transform_3(%arg0: i32) -> (i32, i32) {
    %c0_i32 = arith.constant 0 : i32
    %c0_i32_0 = arith.constant 0 : i32
    %c0_i32_1 = arith.constant 0 : i32
    return %c0_i32, %c0_i32_0 : i32, i32
  }
  func.func @transform_4(%arg0: i32) -> (i32, i32) {
    %c0_i32 = arith.constant 0 : i32
    %c0_i32_0 = arith.constant 0 : i32
    %c0_i32_1 = arith.constant 0 : i32
    return %c0_i32, %c0_i32_0 : i32, i32
  }
  func.func @transform_5(%arg0: i32) -> (i32, i32) {
    %c0_i32 = arith.constant 0 : i32
    %c0_i32_0 = arith.constant 0 : i32
    %c0_i32_1 = arith.constant 0 : i32
    return %c0_i32, %c0_i32_0 : i32, i32
  }
  func.func @transform_6(%arg0: i32) -> (i32, i32) {
    %c0_i32 = arith.constant 0 : i32
    %c0_i32_0 = arith.constant 0 : i32
    return %arg0, %c0_i32 : i32, i32
  }
}

</mosaic_0001>

<llo_original>
// kernel: tpu_custom_call.1
$region0: #{tpu_custom_call.1}
  #allocation0 [shape = 'u32[]', space=smem, size = 0x4, offset = 0x4, fixed_abs, tag = 'smem constant byte address 0x4 - core index']
  #allocation1 [shape = 'u32[72,128]{1,0:T(1,128)}', space=vmem, size = 0x9000, scoped, tag = 'internal scratch']
  %s0 = inlined_call_operand.hbm [shape: f32[8,128], index: 0, kind: input, shape index: {}]
  %s1 = inlined_call_operand.hbm [shape: f32[128,128], index: 1, kind: input, shape index: {}]
  %s2 = inlined_call_operand.hbm [shape: f32[128,128], index: 2, kind: input, shape index: {}]
  %s3 = inlined_call_operand.hbm [shape: f32[128,128], index: 3, kind: input, shape index: {}]
  %s4 = inlined_call_operand.hbm [shape: f32[128,128], index: 4, kind: input, shape index: {}]
  %s5 = inlined_call_operand.vmem [shape: f32[4,128], index: 5, kind: input, shape index: {}]
  %s6 = inlined_call_operand.hbm [shape: f32[8,128], index: 6, kind: output, shape index: {}]
  %s7 = sld [smem:[#allocation0]]
  $region54: #{tpu_custom_call.1} parent=0
    _
  %s9 = ssub.s32 1, %s7
  %s10 = scalar_select 0, %s9, %s7
  $region1: #{tpu_custom_call.1} parent=0
    #allocation2 [shape = 'u8[4096]{0}', space=vmem, size = 0x1000, scoped, tag = 'input window, operand 0, single buffered']
    #allocation3 [shape = 's32[1]{0}', space=sflag, size = 0x4, scoped, tag = 'scoped memory for tpu_custom_call.1']
    #allocation4 [shape = 's32[1]{0}', space=sflag, size = 0x4, scoped, tag = 'scoped memory for tpu_custom_call.1']
    #allocation5 [shape = 'u8[65536]{0}', space=vmem, size = 0x10000, scoped, tag = 'input window, operand 1, single buffered']
    #allocation6 [shape = 's32[1]{0}', space=sflag, size = 0x4, scoped, tag = 'scoped memory for tpu_custom_call.1']
    #allocation7 [shape = 'u8[65536]{0}', space=vmem, size = 0x10000, scoped, tag = 'input window, operand 2, single buffered']
    #allocation8 [shape = 'u8[65536]{0}', space=vmem, size = 0x10000, scoped, tag = 'input window, operand 3, single buffered']
    #allocation9 [shape = 's32[1]{0}', space=sflag, size = 0x4, scoped, tag = 'scoped memory for tpu_custom_call.1']
    #allocation10 [shape = 'u8[65536]{0}', space=vmem, size = 0x10000, scoped, tag = 'input window, operand 4, single buffered']
    #allocation11 [shape = 'u8[4096]{0}', space=vmem, size = 0x1000, scoped, tag = 'output window, operand 0, single buffered']
    %11 = vsyncpa [#allocation3], 0
    %12 = vsyncpa [#allocation6], 0
    %13 = vsyncpa [#allocation9], 0
    %14 = vsyncpa [#allocation4], 0
    // Predicated region
    $region2: #{tpu_custom_call.1} parent=1 // pred_check
      _
    $region3: #{tpu_custom_call.1} parent=1 // pred_check_branch
      %16 = sbr.rel (0) target = $region5
    $region4: #{tpu_custom_call.1} parent=1 // pred_region
      %18 = vsyncadd [#allocation3], 0
      %s20 = sshll.u32 %s0, 4
      %s21 = int_to_ptr.hbm [resolvable:$true] %s20
      %s22 = sshll.u32 [#allocation2], 4
      %s23 = int_to_ptr.vmem [resolvable:$true] %s22
      %25 = dma.hbm_to_vmem [thread:$0]  %s21, 128, %s23, [#allocation3]
    $region5: #{tpu_custom_call.1} parent=1 // pred_fallthru
      _
    // Predicated region
    $region6: #{tpu_custom_call.1} parent=1 // pred_check
      _
    $region7: #{tpu_custom_call.1} parent=1 // pred_check_branch
      %27 = sbr.rel (0) target = $region9
    $region8: #{tpu_custom_call.1} parent=1 // pred_region
      %29 = vsyncadd [#allocation6], 0
      %s30 = sshll.u32 %s1, 4
      %s31 = int_to_ptr.hbm [resolvable:$true] %s30
      %s32 = sshll.u32 [#allocation5], 4
      %s33 = int_to_ptr.vmem [resolvable:$true] %s32
      %38 = dma.hbm_to_vmem [thread:$0]  %s31, 2048, %s33, [#allocation6], 128, 128, 8
    $region9: #{tpu_custom_call.1} parent=1 // pred_fallthru
      _
    // Predicated region
    $region10: #{tpu_custom_call.1} parent=1 // pred_check
      _
    $region11: #{tpu_custom_call.1} parent=1 // pred_check_branch
      %40 = sbr.rel (0) target = $region13
    $region12: #{tpu_custom_call.1} parent=1 // pred_region
      %42 = vsyncadd [#allocation6], 0
      %s43 = sshll.u32 %s2, 4
      %s44 = int_to_ptr.hbm [resolvable:$true] %s43
      %s45 = sshll.u32 [#allocation7], 4
      %s46 = int_to_ptr.vmem [resolvable:$true] %s45
      %51 = dma.hbm_to_vmem [thread:$0]  %s44, 2048, %s46, [#allocation6], 128, 128, 8
    $region13: #{tpu_custom_call.1} parent=1 // pred_fallthru
      _
    // Predicated region
    $region14: #{tpu_custom_call.1} parent=1 // pred_check
      _
    $region15: #{tpu_custom_call.1} parent=1 // pred_check_branch
      %53 = sbr.rel (0) target = $region17
    $region16: #{tpu_custom_call.1} parent=1 // pred_region
      %55 = vsyncadd [#allocation9], 0
      %s56 = sshll.u32 %s3, 4
      %s57 = int_to_ptr.hbm [resolvable:$true] %s56
      %s58 = sshll.u32 [#allocation8], 4
      %s59 = int_to_ptr.vmem [resolvable:$true] %s58
      %64 = dma.hbm_to_vmem [thread:$0]  %s57, 2048, %s59, [#allocation9], 128, 128, 8
    $region17: #{tpu_custom_call.1} parent=1 // pred_fallthru
      _
    // Predicated region
    $region18: #{tpu_custom_call.1} parent=1 // pred_check
      _
    $region19: #{tpu_custom_call.1} parent=1 // pred_check_branch
      %66 = sbr.rel (0) target = $region21
    $region20: #{tpu_custom_call.1} parent=1 // pred_region
      %68 = vsyncadd [#allocation9], 0
      %s69 = sshll.u32 %s4, 4
      %s70 = int_to_ptr.hbm [resolvable:$true] %s69
      %s71 = sshll.u32 [#allocation10], 4
      %s72 = int_to_ptr.vmem [resolvable:$true] %s71
      %77 = dma.hbm_to_vmem [thread:$0]  %s70, 2048, %s72, [#allocation9], 128, 128, 8
    $region21: #{tpu_custom_call.1} parent=1 // pred_fallthru
      _
    // Predicated region
    $region22: #{tpu_custom_call.1} parent=1 // pred_check
      _
    $region23: #{tpu_custom_call.1} parent=1 // pred_check_branch
      %79 = sbr.rel (0) target = $region25
    $region24: #{tpu_custom_call.1} parent=1 // pred_region
      _
    $region25: #{tpu_custom_call.1} parent=1 // pred_fallthru
      _
    // Predicated region
    $region26: #{tpu_custom_call.1} parent=1 // pred_check
      _
    $region27: #{tpu_custom_call.1} parent=1 // pred_check_branch
      %81 = sbr.rel (0) target = $region29
    $region28: #{tpu_custom_call.1} parent=1 // pred_region
      %83 = dma.done [#allocation3], 128
    $region29: #{tpu_custom_call.1} parent=1 // pred_fallthru
      _
    // Predicated region
    $region30: #{tpu_custom_call.1} parent=1 // pred_check
      _
    $region31: #{tpu_custom_call.1} parent=1 // pred_check_branch
      %85 = sbr.rel (0) target = $region33
    $region32: #{tpu_custom_call.1} parent=1 // pred_region
      %87 = dma.done [#allocation6], 2048
    $region33: #{tpu_custom_call.1} parent=1 // pred_fallthru
      _
    // Predicated region
    $region34: #{tpu_custom_call.1} parent=1 // pred_check
      _
    $region35: #{tpu_custom_call.1} parent=1 // pred_check_branch
      %89 = sbr.rel (0) target = $region37
    $region36: #{tpu_custom_call.1} parent=1 // pred_region
      %91 = dma.done [#allocation6], 2048
    $region37: #{tpu_custom_call.1} parent=1 // pred_fallthru
      _
    // Predicated region
    $region38: #{tpu_custom_call.1} parent=1 // pred_check
      _
    $region39: #{tpu_custom_call.1} parent=1 // pred_check_branch
      %93 = sbr.rel (0) target = $region41
    $region40: #{tpu_custom_call.1} parent=1 // pred_region
      %95 = dma.done [#allocation9], 2048
    $region41: #{tpu_custom_call.1} parent=1 // pred_fallthru
      _
    // Predicated region
    $region42: #{tpu_custom_call.1} parent=1 // pred_check
      _
    $region43: #{tpu_custom_call.1} parent=1 // pred_check_branch
      %97 = sbr.rel (0) target = $region45
    $region44: #{tpu_custom_call.1} parent=1 // pred_region
      %99 = dma.done [#allocation9], 2048
    $region45: #{tpu_custom_call.1} parent=1 // pred_fallthru
      _
    %v100 = vld [vmem:[#allocation2] sm:$0xff]
    %v101 = vld [vmem:[#allocation5] sm:$0xff]
    %v102 = vld [vmem:[#allocation5 + $0x8] sm:$0xff]
    %v103 = vld [vmem:[#allocation5 + $0x10] sm:$0xff]
    %v104 = vld [vmem:[#allocation5 + $0x18] sm:$0xff]
    %v105 = vld [vmem:[#allocation5 + $0x20] sm:$0xff]
    %v106 = vld [vmem:[#allocation5 + $0x28] sm:$0xff]
    %v107 = vld [vmem:[#allocation5 + $0x30] sm:$0xff]
    %v108 = vld [vmem:[#allocation5 + $0x38] sm:$0xff]
    %v109 = vld [vmem:[#allocation5 + $0x40] sm:$0xff]
    %v110 = vld [vmem:[#allocation5 + $0x48] sm:$0xff]
    %v111 = vld [vmem:[#allocation5 + $0x50] sm:$0xff]
    %v112 = vld [vmem:[#allocation5 + $0x58] sm:$0xff]
    %v113 = vld [vmem:[#allocation5 + $0x60] sm:$0xff]
    %v114 = vld [vmem:[#allocation5 + $0x68] sm:$0xff]
    %v115 = vld [vmem:[#allocation5 + $0x70] sm:$0xff]
    %v116 = vld [vmem:[#allocation5 + $0x78] sm:$0xff]
    %v117 = vld [vmem:[%s5] sm:$0x1]
    %v118 = vperm.slane %v117, 0
    %119 = vmatpush.msra.mxu0 %v116
    %120 = vmatpush.msra.mxu0 %v115
    %121 = vmatpush.msra.mxu0 %v114
    %122 = vmatpush.msra.mxu0 %v113
    %123 = vmatpush.msra.mxu0 %v112
    %124 = vmatpush.msra.mxu0 %v111
    %125 = vmatpush.msra.mxu0 %v110
    %126 = vmatpush.msra.mxu0 %v109
    %127 = vmatpush.msra.mxu0 %v108
    %128 = vmatpush.msra.mxu0 %v107
    %129 = vmatpush.msra.mxu0 %v106
    %130 = vmatpush.msra.mxu0 %v105
    %131 = vmatpush.msra.mxu0 %v104
    %132 = vmatpush.msra.mxu0 %v103
    %133 = vmatpush.msra.mxu0 %v102
    %134 = vmatpush.msra.mxu0 %v101
    %135 = vmatmul.f32.gmra.mxu0 %v100
    %v136 = vpop.f32.mrf.mxu0
    %v137 = vadd.f32 %v118, %v136
    %138 = vdwg.mxu0
    %v139 = vmax.f32 %v137, 0.0
    %v140 = vld [vmem:[#allocation7] sm:$0xff]
    %v141 = vld [vmem:[#allocation7 + $0x8] sm:$0xff]
    %v142 = vld [vmem:[#allocation7 + $0x10] sm:$0xff]
    %v143 = vld [vmem:[#allocation7 + $0x18] sm:$0xff]
    %v144 = vld [vmem:[#allocation7 + $0x20] sm:$0xff]
    %v145 = vld [vmem:[#allocation7 + $0x28] sm:$0xff]
    %v146 = vld [vmem:[#allocation7 + $0x30] sm:$0xff]
    %v147 = vld [vmem:[#allocation7 + $0x38] sm:$0xff]
    %v148 = vld [vmem:[#allocation7 + $0x40] sm:$0xff]
    %v149 = vld [vmem:[#allocation7 + $0x48] sm:$0xff]
    %v150 = vld [vmem:[#allocation7 + $0x50] sm:$0xff]
    %v151 = vld [vmem:[#allocation7 + $0x58] sm:$0xff]
    %v152 = vld [vmem:[#allocation7 + $0x60] sm:$0xff]
    %v153 = vld [vmem:[#allocation7 + $0x68] sm:$0xff]
    %v154 = vld [vmem:[#allocation7 + $0x70] sm:$0xff]
    %v155 = vld [vmem:[#allocation7 + $0x78] sm:$0xff]
    %v156 = vld [vmem:[%s5 + $0x1] sm:$0x1]
    %v157 = vperm.slane %v156, 0
    %158 = vmatpush.msra.mxu0 %v155
    %159 = vmatpush.msra.mxu0 %v154
    %160 = vmatpush.msra.mxu0 %v153
    %161 = vmatpush.msra.mxu0 %v152
    %162 = vmatpush.msra.mxu0 %v151
    %163 = vmatpush.msra.mxu0 %v150
    %164 = vmatpush.msra.mxu0 %v149
    %165 = vmatpush.msra.mxu0 %v148
    %166 = vmatpush.msra.mxu0 %v147
    %167 = vmatpush.msra.mxu0 %v146
    %168 = vmatpush.msra.mxu0 %v145
    %169 = vmatpush.msra.mxu0 %v144
    %170 = vmatpush.msra.mxu0 %v143
    %171 = vmatpush.msra.mxu0 %v142
    %172 = vmatpush.msra.mxu0 %v141
    %173 = vmatpush.msra.mxu0 %v140
    %174 = vmatmul.f32.gmra.mxu0 %v139
    %v175 = vpop.f32.mrf.mxu0
    %v176 = vadd.f32 %v157, %v175
    %177 = vdwg.mxu0
    %v178 = vmax.f32 %v176, 0.0
    %v179 = vld [vmem:[#allocation8] sm:$0xff]
    %v180 = vld [vmem:[#allocation8 + $0x8] sm:$0xff]
    %v181 = vld [vmem:[#allocation8 + $0x10] sm:$0xff]
    %v182 = vld [vmem:[#allocation8 + $0x18] sm:$0xff]
    %v183 = vld [vmem:[#allocation8 + $0x20] sm:$0xff]
    %v184 = vld [vmem:[#allocation8 + $0x28] sm:$0xff]
    %v185 = vld [vmem:[#allocation8 + $0x30] sm:$0xff]
    %v186 = vld [vmem:[#allocation8 + $0x38] sm:$0xff]
    %v187 = vld [vmem:[#allocation8 + $0x40] sm:$0xff]
    %v188 = vld [vmem:[#allocation8 + $0x48] sm:$0xff]
    %v189 = vld [vmem:[#allocation8 + $0x50] sm:$0xff]
    %v190 = vld [vmem:[#allocation8 + $0x58] sm:$0xff]
    %v191 = vld [vmem:[#allocation8 + $0x60] sm:$0xff]
    %v192 = vld [vmem:[#allocation8 + $0x68] sm:$0xff]
    %v193 = vld [vmem:[#allocation8 + $0x70] sm:$0xff]
    %v194 = vld [vmem:[#allocation8 + $0x78] sm:$0xff]
    %v195 = vld [vmem:[%s5 + $0x2] sm:$0x1]
    %v196 = vperm.slane %v195, 0
    %197 = vmatpush.msra.mxu0 %v194
    %198 = vmatpush.msra.mxu0 %v193
    %199 = vmatpush.msra.mxu0 %v192
    %200 = vmatpush.msra.mxu0 %v191
    %201 = vmatpush.msra.mxu0 %v190
    %202 = vmatpush.msra.mxu0 %v189
    %203 = vmatpush.msra.mxu0 %v188
    %204 = vmatpush.msra.mxu0 %v187
    %205 = vmatpush.msra.mxu0 %v186
    %206 = vmatpush.msra.mxu0 %v185
    %207 = vmatpush.msra.mxu0 %v184
    %208 = vmatpush.msra.mxu0 %v183
    %209 = vmatpush.msra.mxu0 %v182
    %210 = vmatpush.msra.mxu0 %v181
    %211 = vmatpush.msra.mxu0 %v180
    %212 = vmatpush.msra.mxu0 %v179
    %213 = vmatmul.f32.gmra.mxu0 %v178
    %v214 = vpop.f32.mrf.mxu0
    %v215 = vadd.f32 %v196, %v214
    %216 = vdwg.mxu0
    %v217 = vmax.f32 %v215, 0.0
    %v218 = vld [vmem:[#allocation10] sm:$0xff]
    %v219 = vld [vmem:[#allocation10 + $0x8] sm:$0xff]
    %v220 = vld [vmem:[#allocation10 + $0x10] sm:$0xff]
    %v221 = vld [vmem:[#allocation10 + $0x18] sm:$0xff]
    %v222 = vld [vmem:[#allocation10 + $0x20] sm:$0xff]
    %v223 = vld [vmem:[#allocation10 + $0x28] sm:$0xff]
    %v224 = vld [vmem:[#allocation10 + $0x30] sm:$0xff]
    %v225 = vld [vmem:[#allocation10 + $0x38] sm:$0xff]
    %v226 = vld [vmem:[#allocation10 + $0x40] sm:$0xff]
    %v227 = vld [vmem:[#allocation10 + $0x48] sm:$0xff]
    %v228 = vld [vmem:[#allocation10 + $0x50] sm:$0xff]
    %v229 = vld [vmem:[#allocation10 + $0x58] sm:$0xff]
    %v230 = vld [vmem:[#allocation10 + $0x60] sm:$0xff]
    %v231 = vld [vmem:[#allocation10 + $0x68] sm:$0xff]
    %v232 = vld [vmem:[#allocation10 + $0x70] sm:$0xff]
    %v233 = vld [vmem:[#allocation10 + $0x78] sm:$0xff]
    %v234 = vld [vmem:[%s5 + $0x3] sm:$0x1]
    %v235 = vperm.slane %v234, 0
    %236 = vmatpush.msra.mxu0 %v233
    %237 = vmatpush.msra.mxu0 %v232
    %238 = vmatpush.msra.mxu0 %v231
    %239 = vmatpush.msra.mxu0 %v230
    %240 = vmatpush.msra.mxu0 %v229
    %241 = vmatpush.msra.mxu0 %v228
    %242 = vmatpush.msra.mxu0 %v227
    %243 = vmatpush.msra.mxu0 %v226
    %244 = vmatpush.msra.mxu0 %v225
    %245 = vmatpush.msra.mxu0 %v224
    %246 = vmatpush.msra.mxu0 %v223
    %247 = vmatpush.msra.mxu0 %v222
    %248 = vmatpush.msra.mxu0 %v221
    %249 = vmatpush.msra.mxu0 %v220
    %250 = vmatpush.msra.mxu0 %v219
    %251 = vmatpush.msra.mxu0 %v218
    %252 = vmatmul.f32.gmra.mxu0 %v217
    %v253 = vpop.f32.mrf.mxu0
    %v254 = vadd.f32 %v235, %v253
    %255 = vdwg.mxu0
    %256 = vst [vmem:[#allocation11] sm:$0xff] %v254
    // Predicated region
    $region46: #{tpu_custom_call.1} parent=1 // pred_check
      _
    $region47: #{tpu_custom_call.1} parent=1 // pred_check_branch
      %258 = sbr.rel (0) target = $region49
    $region48: #{tpu_custom_call.1} parent=1 // pred_region
      %260 = vsyncadd [#allocation4], 0
      %s262 = sshll.u32 [#allocation11], 4
      %s263 = int_to_ptr.vmem [resolvable:$true] %s262
      %s264 = sshll.u32 %s6, 4
      %s265 = int_to_ptr.hbm [resolvable:$true] %s264
      %267 = dma.vmem_to_hbm [thread:$0]  %s263, 128, %s265, [#allocation4]
    $region49: #{tpu_custom_call.1} parent=1 // pred_fallthru
      _
    // Predicated region
    $region50: #{tpu_custom_call.1} parent=1 // pred_check
      _
    $region51: #{tpu_custom_call.1} parent=1 // pred_check_branch
      %269 = sbr.rel (0) target = $region53
    $region52: #{tpu_custom_call.1} parent=1 // pred_region
      %271 = dma.done [#allocation4], 128
    $region53: #{tpu_custom_call.1} parent=1 // pred_fallthru
      _
    %272 = vsyncpa [#allocation3], 1
    %273 = vsyncpa [#allocation6], 1
    %274 = vsyncpa [#allocation9], 1
    %275 = vsyncpa [#allocation4], 1

</llo_original>
